<compile_context>
chip_gen: v5e
topology: v5e:2x2
jax: 0.10.0
libtpu: 0.0.40
codegen_flags: <defaults>
</compile_context>

<pallas_src>
import functools

import jax
import jax.numpy as jnp
from jax.experimental import pallas as pl
from jax.experimental.pallas import tpu as pltpu


# 256-multiples preferred (v6e/v7x MXU is 2x256x256); 128 kept for v5e / small dims.
_TILE_CANDS = (1024, 768, 512, 256, 128)


def _round_up(x, m):
    return ((x + m - 1) // m) * m


def _pick_tile(padded, candidates):
    for c in candidates:
        if padded % c == 0:
            return c
    return padded


def _shrink_tile(t):
    """Largest smaller candidate that divides t (keeps padded-dim divisibility)."""
    for c in _TILE_CANDS:
        if c < t and t % c == 0:
            return c
    return t


def _vmem_cap_bytes():
    """Physical VMEM minus fixed headroom for Mosaic internal scratch/semaphores.

    -> ~112 MiB on 128 MiB parts (v5e/v6e), ~48 MiB on 64 MiB parts (v7x).
    """
    try:
        phys = int(pltpu.get_tpu_info().vmem_capacity_bytes)
    except Exception:
        phys = 64 << 20
    return max(phys - (16 << 20), 32 << 20)


def _linear_kernel_acc(x_ref, w_ref, b_ref, o_ref, acc_ref):
    # Generic path: f32 scratch accumulator, bias + cast at the last K step.
    k = pl.program_id(2)

    @pl.when(k == 0)
    def _():
        acc_ref[...] = jnp.zeros_like(acc_ref)

    acc_ref[...] += jnp.dot(
        x_ref[...], w_ref[...], preferred_element_type=jnp.float32
    )

    @pl.when(k == pl.num_programs(2) - 1)
    def _():
        o_ref[...] = (acc_ref[...] + b_ref[...]).astype(o_ref.dtype)


def _linear_kernel_f32out(x_ref, w_ref, b_ref, o_ref):
    # f32-output path: accumulate straight into the resident output block (its
    # block index is K-invariant), saving tm*tn*4 B of VMEM and the epilogue copy.
    k = pl.program_id(2)

    @pl.when(k == 0)
    def _():
        o_ref[...] = jnp.broadcast_to(b_ref[...], o_ref.shape)

    o_ref[...] += jnp.dot(
        x_ref[...], w_ref[...], preferred_element_type=jnp.float32
    )


def prepare_flattened_linear_params(w, b, compute_dtype=jnp.bfloat16):
    """Pad (to 128-multiples) and cast the weight/bias ONCE, outside the hot path.

    w: [K, N] = [nclasses*in_feats, nclasses*out_feats] (pre-transposed PyTorch weight)
    b: [N]
    """
    K, N = w.shape
    assert b.shape == (N,)
    K_pad, N_pad = _round_up(K, 128), _round_up(N, 128)
    w_pad = jnp.pad(w, ((0, K_pad - K), (0, N_pad - N))).astype(compute_dtype)
    b_pad = jnp.pad(b, (0, N_pad - N)).reshape(1, N_pad).astype(jnp.float32)
    return w_pad, b_pad


def flattened_linear_padded(x, w_pad, b_pad, *, nclasses, out_feats,
                            compute_dtype=jnp.bfloat16):
    """Pallas FlattenedLinear.forward on pre-padded / pre-cast parameters.

    x:      [..., nclasses, in_feats]        (float dtype; sets the output dtype)
    w_pad:  [K_pad, N_pad] in compute_dtype  (from prepare_flattened_linear_params)
    b_pad:  [1, N_pad] float32
    returns [..., nclasses, out_feats] in x.dtype
    """
    lead = x.shape[:-2]
    assert x.shape[-2] == nclasses
    in_dim = x.shape[-2] * x.shape[-1]
    out_dim = nclasses * out_feats
    K_pad, N_pad = w_pad.shape
    assert K_pad == _round_up(in_dim, 128) and N_pad == _round_up(out_dim, 128)

    out_dtype = x.dtype
    in_bytes = jnp.dtype(compute_dtype).itemsize
    out_bytes = jnp.dtype(out_dtype).itemsize

    x_flat = x.reshape(-1, in_dim)
    M = x_flat.shape[0]

    # M padding: align to the sublane packing factor of compute_dtype
    # (8 rows for f32, 16 for bf16, 32 for int8) so small-M stores stay unmasked.
    sub_pack = (32 // (8 * in_bytes)) * 8
    M_pad = _round_up(M, 128) if M >= 128 else _round_up(M, sub_pack)

    # Tile choice: as large as the padded dims allow.
    tm = _pick_tile(M_pad, _TILE_CANDS) if M_pad >= 128 else M_pad
    tk = _pick_tile(K_pad, _TILE_CANDS)
    tn = _pick_tile(N_pad, _TILE_CANDS)

    # v7x megacore: keep >= 2 blocks on the parallel (i, j) axes so both
    # TensorCores get work (harmless no-op on single-core v5e/v6e).
    if (M_pad // tm) * (N_pad // tn) < 2:
        if N_pad >= 2 * 128:
            tn = _pick_tile(N_pad, tuple(c for c in _TILE_CANDS if c <= N_pad // 2))
        elif M_pad >= 2 * 128:
            tm = _pick_tile(M_pad, tuple(c for c in _TILE_CANDS if c <= M_pad // 2))

    direct_f32_out = jnp.dtype(out_dtype) == jnp.dtype(jnp.float32)

    # Small-M regime is pure weight streaming: a 3-deep buffer on the W tile
    # hides DMA issue latency (only worth it when >= 3 weight tiles are streamed).
    w_buffers = 3 if (tm <= 128 and (K_pad // tk) * (N_pad // tn) >= 3) else 2

    vmem_cap = _vmem_cap_bytes()

    def _vmem_need(tm_, tn_, tk_):
        return (2 * tm_ * tk_ * in_bytes                       # x (double-buffered)
                + w_buffers * tk_ * tn_ * in_bytes              # w
                + 2 * tn_ * 4                                   # bias (f32)
                + 2 * tm_ * tn_ * out_bytes                     # output
                + (0 if direct_f32_out else tm_ * tn_ * 4))     # acc scratch

    # Shrink tk -> tn -> tm until the working set fits the per-generation cap.
    while _vmem_need(tm, tn, tk) > vmem_cap:
        if _shrink_tile(tk) != tk:
            tk = _shrink_tile(tk)
        elif _shrink_tile(tn) != tn:
            tn = _shrink_tile(tn)
        elif _shrink_tile(tm) != tm:
            tm = _shrink_tile(tm)
        else:
            break

    vmem_limit = int(min(max(2 * _vmem_need(tm, tn, tk), 32 << 20), vmem_cap))

    # x is padded/cast here (fuses under jit); W/b were prepared once outside.
    x_p = jnp.pad(x_flat, ((0, M_pad - M), (0, K_pad - in_dim))).astype(compute_dtype)

    grid = (M_pad // tm, N_pad // tn, K_pad // tk)

    w_spec_kwargs = {}
    if w_buffers == 3:
        w_spec_kwargs["pipeline_mode"] = pl.Buffered(3)

    if direct_f32_out:
        kernel = _linear_kernel_f32out
        scratch_shapes = []
    else:
        kernel = _linear_kernel_acc
        scratch_shapes = [pltpu.VMEM((tm, tn), jnp.float32)]

    cost = pl.CostEstimate(
        flops=2 * M_pad * K_pad * N_pad,
        transcendentals=0,
        bytes_accessed=(
            (N_pad // tn) * M_pad * K_pad * in_bytes      # x re-read per output col
            + (M_pad // tm) * K_pad * N_pad * in_bytes    # w re-read per output row
            + N_pad * 4
            + M_pad * N_pad * out_bytes
        ),
    )

    y_p = pl.pallas_call(
        kernel,
        out_shape=jax.ShapeDtypeStruct((M_pad, N_pad), out_dtype),
        grid_spec=pltpu.PrefetchScalarGridSpec(
            num_scalar_prefetch=0,
            grid=grid,
            in_specs=[
                pl.BlockSpec((tm, tk), lambda i, j, k: (i, k)),
                pl.BlockSpec((tk, tn), lambda i, j, k: (k, j), **w_spec_kwargs),
                pl.BlockSpec((1, tn), lambda i, j, k: (0, j)),
            ],
            out_specs=pl.BlockSpec((tm, tn), lambda i, j, k: (i, j)),
            scratch_shapes=scratch_shapes,
        ),
        compiler_params=pltpu.CompilerParams(
            dimension_semantics=("parallel", "parallel", "arbitrary"),
            vmem_limit_bytes=vmem_limit,
        ),
        cost_estimate=cost,
    )(x_p, w_pad, b_pad)

    y = y_p[:M, :out_dim]
    return y.reshape(lead + (nclasses, out_feats))


def flattened_linear(x, w, b, nclasses, out_feats, compute_dtype=jnp.bfloat16):
    """One-shot convenience wrapper (pads W/b per call). For the hot path, call
    prepare_flattened_linear_params once and reuse flattened_linear_padded."""
    w_pad, b_pad = prepare_flattened_linear_params(w, b, compute_dtype)
    return flattened_linear_padded(x, w_pad, b_pad, nclasses=nclasses,
                                   out_feats=out_feats, compute_dtype=compute_dtype)


if __name__ == "__main__":
    # Small shapes consistent with the module's forward:
    #   batch=2, seq=8 (arbitrary leading dims), nclasses=4, in_feats=8, out_feats=8
    batch, seq = 2, 8
    nclasses, in_feats, out_feats = 4, 8, 8
    in_dim = nclasses * in_feats
    out_dim = nclasses * out_feats

    key = jax.random.PRNGKey(0)
    kx, kw, kb = jax.random.split(key, 3)

    x = jax.random.normal(kx, (batch, seq, nclasses, in_feats), dtype=jnp.float32)

    # Deterministic init mimicking nn.Linear's uniform(-1/sqrt(fan_in), 1/sqrt(fan_in)).
    # PyTorch Linear stores weight as [out_dim, in_dim]; keep the transposed
    # [in_dim, out_dim] layout for the kernel (y = x @ W^T == x @ w).
    bound = 1.0 / jnp.sqrt(jnp.float32(in_dim))
    w = jax.random.uniform(kw, (in_dim, out_dim), minval=-bound, maxval=bound,
                           dtype=jnp.float32)
    b = jax.random.uniform(kb, (out_dim,), minval=-bound, maxval=bound,
                           dtype=jnp.float32)

    # Pure-JAX reference (same semantics as FlattenedLinear.forward).
    y_ref = (x.reshape(batch, seq, in_dim) @ w + b).reshape(
        batch, seq, nclasses, out_feats)

    # --- f32 MXU-operand path: tight correctness check ---
    w_pad32, b_pad32 = prepare_flattened_linear_params(w, b, compute_dtype=jnp.float32)
    fwd_f32 = jax.jit(functools.partial(
        flattened_linear_padded, nclasses=nclasses, out_feats=out_feats,
        compute_dtype=jnp.float32))
    y_f32 = jax.block_until_ready(fwd_f32(x, w_pad32, b_pad32))
    assert y_f32.shape == (batch, seq, nclasses, out_feats)
    assert jnp.allclose(y_f32, y_ref, atol=1e-5, rtol=1e-5)

    # --- default bf16 MXU-operand / f32-accumulation path (perf default) ---
    w_pad16, b_pad16 = prepare_flattened_linear_params(w, b)   # bf16 by default
    fwd_bf16 = jax.jit(functools.partial(
        flattened_linear_padded, nclasses=nclasses, out_feats=out_feats,
        compute_dtype=jnp.bfloat16))
    y_bf16 = jax.block_until_ready(fwd_bf16(x, w_pad16, b_pad16))
    assert y_bf16.shape == (batch, seq, nclasses, out_feats)
    assert jnp.allclose(y_bf16, y_ref, atol=5e-2, rtol=5e-2)

    print("KERNEL_OK")
</pallas_src>

<mosaic_0001>
module attributes {stable_mosaic.version = 11 : i64} {
  func.func @_linear_kernel_f32out(%arg0: i32, %arg1: i32, %arg2: i32, %arg3: memref<16x128xf32, #tpu.memory_space<vmem>>, %arg4: memref<128x128xf32, #tpu.memory_space<vmem>>, %arg5: memref<1x128xf32, #tpu.memory_space<vmem>>, %arg6: memref<16x128xf32, #tpu.memory_space<vmem>>) attributes {dimension_semantics = [#tpu.dimension_semantics<parallel>, #tpu.dimension_semantics<parallel>, #tpu.dimension_semantics<arbitrary>], iteration_bounds = array<i64: 1, 1, 1>, scalar_prefetch = 0 : i64, scratch_operands = 0 : i64, tpu.core_type = #tpu.core_type<tc>, window_params = [{transform_indices = @transform_0, window_bounds = array<i64: 16, 128>}, {transform_indices = @transform_1, window_bounds = array<i64: 128, 128>}, {transform_indices = @transform_2, window_bounds = array<i64: 1, 128>}, {transform_indices = @transform_3, window_bounds = array<i64: 16, 128>}]} {
    %c0_i32 = arith.constant 0 : i32
    %0 = arith.cmpi eq, %arg2, %c0_i32 : i32
    %1 = arith.extui %0 : i1 to i32
    %c0_i32_0 = arith.constant 0 : i32
    %2 = arith.cmpi ne, %1, %c0_i32_0 : i32
    scf.if %2 {
      %c0_8 = arith.constant 0 : index
      %c0_9 = arith.constant 0 : index
      %9 = vector.load %arg5[%c0_8, %c0_9] : memref<1x128xf32, #tpu.memory_space<vmem>>, vector<1x128xf32>
      %10 = vector.shape_cast %9 : vector<1x128xf32> to vector<1x128xf32>
      %11 = vector.broadcast %10 : vector<1x128xf32> to vector<16x128xf32>
      %c0_10 = arith.constant 0 : index
      %c0_11 = arith.constant 0 : index
      %12 = vector.load %arg6[%c0_10, %c0_11] : memref<16x128xf32, #tpu.memory_space<vmem>>, vector<16x128xf32>
      tpu.vector_store %arg6[%c0_10, %c0_11], %11 {strides = array<i32>} : memref<16x128xf32, #tpu.memory_space<vmem>>, vector<16x128xf32>,
    } else {
    }
    %c0 = arith.constant 0 : index
    %c0_1 = arith.constant 0 : index
    %3 = vector.load %arg6[%c0, %c0_1] : memref<16x128xf32, #tpu.memory_space<vmem>>, vector<16x128xf32>
    %c0_2 = arith.constant 0 : index
    %c0_3 = arith.constant 0 : index
    %4 = vector.load %arg3[%c0_2, %c0_3] : memref<16x128xf32, #tpu.memory_space<vmem>>, vector<16x128xf32>
    %c0_4 = arith.constant 0 : index
    %c0_5 = arith.constant 0 : index
    %5 = vector.load %arg4[%c0_4, %c0_5] : memref<128x128xf32, #tpu.memory_space<vmem>>, vector<128x128xf32>
    %cst = arith.constant dense<0.000000e+00> : vector<16x128xf32>
    %6 = tpu.matmul %4, %5, %cst {dimension_numbers = #tpu.dot_dimension_numbers<[1], [0], [0], [1], [0, 0, 1, 1], [], []>} : vector<16x128xf32>, vector<128x128xf32>, vector<16x128xf32> -> vector<16x128xf32>
    %7 = arith.addf %3, %6 : vector<16x128xf32>
    %c0_6 = arith.constant 0 : index
    %c0_7 = arith.constant 0 : index
    %8 = vector.load %arg6[%c0_6, %c0_7] : memref<16x128xf32, #tpu.memory_space<vmem>>, vector<16x128xf32>
    tpu.vector_store %arg6[%c0_6, %c0_7], %7 {strides = array<i32>} : memref<16x128xf32, #tpu.memory_space<vmem>>, vector<16x128xf32>,
    return
  }
  func.func @transform_0(%arg0: i32, %arg1: i32, %arg2: i32) -> (i32, i32) {
    %c0_i32 = arith.constant 0 : i32
    return %arg0, %arg2 : i32, i32
  }
  func.func @transform_1(%arg0: i32, %arg1: i32, %arg2: i32) -> (i32, i32) {
    %c0_i32 = arith.constant 0 : i32
    return %arg2, %arg1 : i32, i32
  }
  func.func @transform_2(%arg0: i32, %arg1: i32, %arg2: i32) -> (i32, i32) {
    %c0_i32 = arith.constant 0 : i32
    %c0_i32_0 = arith.constant 0 : i32
    return %c0_i32, %arg1 : i32, i32
  }
  func.func @transform_3(%arg0: i32, %arg1: i32, %arg2: i32) -> (i32, i32) {
    %c0_i32 = arith.constant 0 : i32
    return %arg0, %arg1 : i32, i32
  }
}

</mosaic_0001>

<llo_original>
// kernel: flattened_linear_padded.1
$region0: #{flattened_linear_padded.1}
  #allocation0 [shape = 'u32[]', space=smem, size = 0x4, offset = 0x4, fixed_abs, tag = 'smem constant byte address 0x4 - core index']
  #allocation1 [shape = 'u32[72,128]{1,0:T(1,128)}', space=vmem, size = 0x9000, scoped, tag = 'internal scratch']
  %s0 = inlined_call_operand.vmem [shape: f32[16,128], index: 0, kind: input, shape index: {}]
  %s1 = inlined_call_operand.hbm [shape: f32[128,128], index: 1, kind: input, shape index: {}]
  %s2 = inlined_call_operand.vmem [shape: f32[1,128], index: 2, kind: input, shape index: {}]
  %s3 = inlined_call_operand.vmem [shape: f32[16,128], index: 3, kind: output, shape index: {}]
  %s4 = sld [smem:[#allocation0]]
  $region30: #{flattened_linear_padded.1} parent=0
    _
  %s6 = ssub.s32 1, %s4
  %s7 = scalar_select 0, %s6, %s4
  $region1: #{flattened_linear_padded.1} parent=0
    #allocation2 [shape = 'u8[65536]{0}', space=vmem, size = 0x10000, scoped, tag = 'input window, operand 1, single buffered']
    #allocation3 [shape = 's32[1]{0}', space=sflag, size = 0x4, scoped, tag = 'scoped memory for flattened_linear_padded.1']
    %8 = vsyncpa [#allocation3], 0
    // Predicated region
    $region2: #{flattened_linear_padded.1} parent=1 // pred_check
      _
    $region3: #{flattened_linear_padded.1} parent=1 // pred_check_branch
      %10 = sbr.rel (0) target = $region5
    $region4: #{flattened_linear_padded.1} parent=1 // pred_region
      _
    $region5: #{flattened_linear_padded.1} parent=1 // pred_fallthru
      _
    // Predicated region
    $region6: #{flattened_linear_padded.1} parent=1 // pred_check
      _
    $region7: #{flattened_linear_padded.1} parent=1 // pred_check_branch
      %12 = sbr.rel (0) target = $region9
    $region8: #{flattened_linear_padded.1} parent=1 // pred_region
      %14 = vsyncadd [#allocation3], 0
      %s15 = sshll.u32 %s1, 4
      %s16 = int_to_ptr.hbm [resolvable:$true] %s15
      %s17 = sshll.u32 [#allocation2], 4
      %s18 = int_to_ptr.vmem [resolvable:$true] %s17
      %23 = dma.hbm_to_vmem [thread:$0]  %s16, 2048, %s18, [#allocation3], 128, 128, 8
    $region9: #{flattened_linear_padded.1} parent=1 // pred_fallthru
      _
    // Predicated region
    $region10: #{flattened_linear_padded.1} parent=1 // pred_check
      _
    $region11: #{flattened_linear_padded.1} parent=1 // pred_check_branch
      %25 = sbr.rel (0) target = $region13
    $region12: #{flattened_linear_padded.1} parent=1 // pred_region
      _
    $region13: #{flattened_linear_padded.1} parent=1 // pred_fallthru
      _
    // Predicated region
    $region14: #{flattened_linear_padded.1} parent=1 // pred_check
      _
    $region15: #{flattened_linear_padded.1} parent=1 // pred_check_branch
      %27 = sbr.rel (0) target = $region17
    $region16: #{flattened_linear_padded.1} parent=1 // pred_region
      %29 = dma.done [#allocation3], 2048
    $region17: #{flattened_linear_padded.1} parent=1 // pred_fallthru
      _
    %p30 = scmp.eq.s32.totalorder 0, 0
    // Predicated region
    $region18: #{flattened_linear_padded.1} parent=1 // pred_check
      %p31 = pneg %p30
    $region19: #{flattened_linear_padded.1} parent=1 // pred_check_branch
      %33 = sbr.rel (%p31) target = $region21
    $region20: #{flattened_linear_padded.1} parent=1 // pred_region
      %v34 = vld [vmem:[%s2] sm:$0x1]
      %v36 = vperm.slane %v34, 0
      %38 = vst [vmem:[%s3] sm:$0xff] %v36
      %39 = vst [vmem:[%s3 + $0x8] sm:$0xff] %v36
    $region21: #{flattened_linear_padded.1} parent=1 // pred_fallthru
      _
    %v40 = vld [vmem:[%s3] sm:$0xff]
    %v41 = vld [vmem:[%s3 + $0x8] sm:$0xff]
    %v42 = vld [vmem:[%s0] sm:$0xff]
    %v43 = vld [vmem:[%s0 + $0x8] sm:$0xff]
    %v44 = vld [vmem:[#allocation2] sm:$0xff]
    %v45 = vld [vmem:[#allocation2 + $0x8] sm:$0xff]
    %v46 = vld [vmem:[#allocation2 + $0x10] sm:$0xff]
    %v47 = vld [vmem:[#allocation2 + $0x18] sm:$0xff]
    %v48 = vld [vmem:[#allocation2 + $0x20] sm:$0xff]
    %v49 = vld [vmem:[#allocation2 + $0x28] sm:$0xff]
    %v50 = vld [vmem:[#allocation2 + $0x30] sm:$0xff]
    %v51 = vld [vmem:[#allocation2 + $0x38] sm:$0xff]
    %v52 = vld [vmem:[#allocation2 + $0x40] sm:$0xff]
    %v53 = vld [vmem:[#allocation2 + $0x48] sm:$0xff]
    %v54 = vld [vmem:[#allocation2 + $0x50] sm:$0xff]
    %v55 = vld [vmem:[#allocation2 + $0x58] sm:$0xff]
    %v56 = vld [vmem:[#allocation2 + $0x60] sm:$0xff]
    %v57 = vld [vmem:[#allocation2 + $0x68] sm:$0xff]
    %v58 = vld [vmem:[#allocation2 + $0x70] sm:$0xff]
    %v59 = vld [vmem:[#allocation2 + $0x78] sm:$0xff]
    %60 = vmatpush.msra.mxu0 %v59
    %61 = vmatpush.msra.mxu0 %v58
    %62 = vmatpush.msra.mxu0 %v57
    %63 = vmatpush.msra.mxu0 %v56
    %64 = vmatpush.msra.mxu0 %v55
    %65 = vmatpush.msra.mxu0 %v54
    %66 = vmatpush.msra.mxu0 %v53
    %67 = vmatpush.msra.mxu0 %v52
    %68 = vmatpush.msra.mxu0 %v51
    %69 = vmatpush.msra.mxu0 %v50
    %70 = vmatpush.msra.mxu0 %v49
    %71 = vmatpush.msra.mxu0 %v48
    %72 = vmatpush.msra.mxu0 %v47
    %73 = vmatpush.msra.mxu0 %v46
    %74 = vmatpush.msra.mxu0 %v45
    %75 = vmatpush.msra.mxu0 %v44
    %76 = vmatmul.f32.gmra.mxu0 %v42
    %v77 = vpop.f32.mrf.mxu0
    %v78 = vadd.f32 0.0, %v77
    %79 = vmatmul.f32.gmra.mxu0 %v43
    %v80 = vpop.f32.mrf.mxu0
    %v81 = vadd.f32 0.0, %v80
    %82 = vdwg.mxu0
    %v83 = vadd.f32 %v40, %v78
    %v84 = vadd.f32 %v41, %v81
    %85 = vst [vmem:[%s3] sm:$0xff] %v83
    %86 = vst [vmem:[%s3 + $0x8] sm:$0xff] %v84
    // Predicated region
    $region22: #{flattened_linear_padded.1} parent=1 // pred_check
      _
    $region23: #{flattened_linear_padded.1} parent=1 // pred_check_branch
      %88 = sbr.rel (0) target = $region25
    $region24: #{flattened_linear_padded.1} parent=1 // pred_region
      _
    $region25: #{flattened_linear_padded.1} parent=1 // pred_fallthru
      _
    // Predicated region
    $region26: #{flattened_linear_padded.1} parent=1 // pred_check
      _
    $region27: #{flattened_linear_padded.1} parent=1 // pred_check_branch
      %90 = sbr.rel (0) target = $region29
    $region28: #{flattened_linear_padded.1} parent=1 // pred_region
      _
    $region29: #{flattened_linear_padded.1} parent=1 // pred_fallthru
      _
    %91 = vsyncpa [#allocation3], 1

</llo_original>
